<compile_context>
chip_gen: v5e
topology: v5e:2x2
jax: 0.10.0
libtpu: 0.0.40
codegen_flags: <defaults>
</compile_context>

<pallas_src>
import functools
import math

import jax
import jax.numpy as jnp
from jax import lax
from jax.experimental import pallas as pl
from jax.experimental.pallas import tpu as pltpu


def _round_up(x, m):
    return ((x + m - 1) // m) * m


def _gcn_kernel(x_ref, w_ref, b_ref, gamma_ref, beta_ref, o_ref, *,
                inv_c: float, eps: float, cast_bf16: bool):
    x = x_ref[...]
    if cast_bf16:
        # In-kernel cast of the streamed tile: free VPU work hidden under DMA.
        # (True HBM-bandwidth savings require x already bf16-resident in HBM.)
        x = x.astype(jnp.bfloat16)

    # Linear: x @ W^T + b (W pre-transposed once in the wrapper).
    # MXU matmul with f32 accumulation regardless of input dtype.
    h = jnp.dot(x, w_ref[...], preferred_element_type=jnp.float32)
    h = h + b_ref[...]

    # LayerNorm over the (unpadded) feature dim; eps=1e-5 (PyTorch default).
    mean = jnp.sum(h, axis=-1, keepdims=True) * inv_c
    centered = h - mean
    var = jnp.sum(centered * centered, axis=-1, keepdims=True) * inv_c
    h_norm = centered * lax.rsqrt(var + eps)
    h_norm = h_norm * gamma_ref[...] + beta_ref[...]

    # Exact GELU (erf form), matching F.gelu's default.
    out = 0.5 * h_norm * (1.0 + lax.erf(h_norm * (1.0 / math.sqrt(2.0))))
    o_ref[...] = out.astype(o_ref.dtype)


def graph_conv_layer(x, w, b, gamma, beta, *, tile_m=None,
                     use_bf16_matmul=False, eps=1e-5):
    """GraphConvLayer forward: GELU(LayerNorm(x @ W.T + b)).

    x:     (B, N, C_in) float32
    w:     (C_out, C_in)  -- nn.Linear weight layout
    b:     (C_out,)
    gamma: (C_out,)       -- LayerNorm weight
    beta:  (C_out,)       -- LayerNorm bias
    returns (B, N, C_out) float32
    """
    B, N, C_in = x.shape
    C_out = w.shape[0]
    M = B * N

    # Small one-time parameter preps (no extra pass over x or the output).
    w_dtype = jnp.bfloat16 if use_bf16_matmul else jnp.float32
    w_t = w.T.astype(w_dtype)                       # (C_in, C_out), VMEM-resident
    b2d = b.astype(jnp.float32).reshape(1, C_out)
    g2d = gamma.astype(jnp.float32).reshape(1, C_out)
    be2d = beta.astype(jnp.float32).reshape(1, C_out)

    x2d = x.reshape(M, C_in)                        # contiguous reshape: free
    x_bytes = x2d.dtype.itemsize
    w_bytes = w_t.dtype.itemsize

    # --- Row-tile size -------------------------------------------------------
    M8 = _round_up(M, 8)
    if tile_m is None:
        # Target ~4 MiB of double-buffered traffic per grid step.
        per_row = 2 * (C_in * x_bytes + C_out * 4)
        tile_m = max(512, (4 << 20) // max(per_row, 1))
    TM = max(8, (min(tile_m, M8) // 8) * 8)         # multiple of 8 (sublane rule)
    # Keep >= 2 grid steps when possible so "parallel" can use both v7x TCs.
    if TM >= M8 and M8 >= 16:
        TM = max(8, ((M8 // 2) // 8) * 8)

    def vmem_budget(tm):
        stream = 2 * tm * C_in * x_bytes + 2 * tm * C_out * 4     # dbl-buffered in/out
        resident = C_in * C_out * w_bytes + 3 * C_out * 4
        temps = tm * C_in * 4 + 4 * tm * C_out * 4                # h/centered/out/etc.
        return stream + resident + temps

    # Fit comfortably inside v5e's 16 MiB scoped default (and v7x's 64 MiB).
    while TM > 8 and vmem_budget(TM) > (12 << 20):
        TM = max(8, ((TM // 2) // 8) * 8)

    grid_m = pl.cdiv(M, TM)   # ragged tail: rows are independent, Pallas clips it

    kernel = functools.partial(_gcn_kernel, inv_c=1.0 / C_out, eps=eps,
                               cast_bf16=use_bf16_matmul)

    cost = pl.CostEstimate(
        flops=2 * M * C_in * C_out,
        transcendentals=M * C_out + M,              # erf per element + rsqrt per row
        bytes_accessed=(M * C_in * x_bytes + M * C_out * 4
                        + C_in * C_out * w_bytes + 3 * C_out * 4),
    )

    out2d = pl.pallas_call(
        kernel,
        out_shape=jax.ShapeDtypeStruct((M, C_out), jnp.float32),
        grid_spec=pltpu.PrefetchScalarGridSpec(
            num_scalar_prefetch=0,
            grid=(grid_m,),
            in_specs=[
                pl.BlockSpec((TM, C_in), lambda i: (i, 0)),      # streamed rows
                pl.BlockSpec((C_in, C_out), lambda i: (0, 0)),   # VMEM-resident
                pl.BlockSpec((1, C_out), lambda i: (0, 0)),
                pl.BlockSpec((1, C_out), lambda i: (0, 0)),
                pl.BlockSpec((1, C_out), lambda i: (0, 0)),
            ],
            out_specs=pl.BlockSpec((TM, C_out), lambda i: (i, 0)),
        ),
        compiler_params=pltpu.CompilerParams(
            # Independent row tiles: shard grid steps across both TCs on v7x.
            dimension_semantics=("parallel",),
            vmem_limit_bytes=int(min(32 << 20,
                                     max(16 << 20, 2 * vmem_budget(TM)))),
        ),
        cost_estimate=cost,
    )(x2d, w_t, b2d, g2d, be2d)

    return out2d.reshape(B, N, C_out)


def _reference(x, w, b, gamma, beta, eps=1e-5):
    h = jnp.einsum("bnc,dc->bnd", x, w) + b
    mean = jnp.mean(h, axis=-1, keepdims=True)
    var = jnp.mean((h - mean) ** 2, axis=-1, keepdims=True)
    hn = (h - mean) / jnp.sqrt(var + eps)
    hn = hn * gamma + beta
    return 0.5 * hn * (1.0 + lax.erf(hn / math.sqrt(2.0)))


if __name__ == "__main__":
    # Small shapes consistent with the module: (batch, num_nodes, in_channels)
    B, N, C_in, C_out = 2, 8, 32, 32

    key = jax.random.PRNGKey(0)
    kx, kw, kb, kr = jax.random.split(key, 4)

    x = jax.random.normal(kx, (B, N, C_in), dtype=jnp.float32)

    # Deterministic parameter init mimicking nn.Linear defaults.
    bound = 1.0 / math.sqrt(C_in)
    w = jax.random.uniform(kw, (C_out, C_in), jnp.float32, -bound, bound)
    b = jax.random.uniform(kb, (C_out,), jnp.float32, -bound, bound)

    # LayerNorm params: PyTorch default init (weight=1, bias=0).
    gamma = jnp.ones((C_out,), jnp.float32)
    beta = jnp.zeros((C_out,), jnp.float32)

    ref = _reference(x, w, b, gamma, beta)

    # 1) f32 path with auto tile size (exact-match semantics, 2-step grid).
    out = graph_conv_layer(x, w, b, gamma, beta)
    jax.block_until_ready(out)
    assert out.shape == (B, N, C_out)
    assert jnp.allclose(out, ref, atol=1e-5, rtol=1e-5)

    # 2) Same kernel with an explicit tiny tile (multi-step pipelining path).
    out_tiled = graph_conv_layer(x, w, b, gamma, beta, tile_m=8)
    jax.block_until_ready(out_tiled)
    assert jnp.allclose(out_tiled, ref, atol=1e-5, rtol=1e-5)

    # 3) Ragged row count (M = 14 not a multiple of TM): Pallas clips the tail.
    x_r = jax.random.normal(kr, (B, 7, C_in), dtype=jnp.float32)
    ref_r = _reference(x_r, w, b, gamma, beta)
    out_r = graph_conv_layer(x_r, w, b, gamma, beta)
    jax.block_until_ready(out_r)
    assert out_r.shape == (B, 7, C_out)
    assert jnp.allclose(out_r, ref_r, atol=1e-5, rtol=1e-5)

    # 4) bf16 MXU-input path (in-kernel cast, f32 accum/LN/GELU), loose tol.
    out_bf16 = graph_conv_layer(x, w, b, gamma, beta, use_bf16_matmul=True)
    jax.block_until_ready(out_bf16)
    assert jnp.allclose(out_bf16, ref, atol=5e-2, rtol=5e-2)

    print("KERNEL_OK")
</pallas_src>

<mosaic_0001>
module attributes {stable_mosaic.version = 11 : i64} {
  func.func @_gcn_kernel(%arg0: i32, %arg1: memref<8x32xf32, #tpu.memory_space<vmem>>, %arg2: memref<32x32xf32, #tpu.memory_space<vmem>>, %arg3: memref<1x32xf32, #tpu.memory_space<vmem>>, %arg4: memref<1x32xf32, #tpu.memory_space<vmem>>, %arg5: memref<1x32xf32, #tpu.memory_space<vmem>>, %arg6: memref<8x32xf32, #tpu.memory_space<vmem>>) attributes {dimension_semantics = [#tpu.dimension_semantics<parallel>], iteration_bounds = array<i64: 2>, scalar_prefetch = 0 : i64, scratch_operands = 0 : i64, tpu.core_type = #tpu.core_type<tc>, window_params = [{transform_indices = @transform_0, window_bounds = array<i64: 8, 32>}, {pipeline_mode = #tpu.pipeline_mode<synchronous>, transform_indices = @transform_1, window_bounds = array<i64: 32, 32>}, {pipeline_mode = #tpu.pipeline_mode<synchronous>, transform_indices = @transform_2, window_bounds = array<i64: 1, 32>}, {pipeline_mode = #tpu.pipeline_mode<synchronous>, transform_indices = @transform_3, window_bounds = array<i64: 1, 32>}, {pipeline_mode = #tpu.pipeline_mode<synchronous>, transform_indices = @transform_4, window_bounds = array<i64: 1, 32>}, {transform_indices = @transform_5, window_bounds = array<i64: 8, 32>}]} {
    %c0 = arith.constant 0 : index
    %c0_0 = arith.constant 0 : index
    %0 = vector.load %arg1[%c0, %c0_0] : memref<8x32xf32, #tpu.memory_space<vmem>>, vector<8x32xf32>
    %c0_1 = arith.constant 0 : index
    %c0_2 = arith.constant 0 : index
    %1 = vector.load %arg2[%c0_1, %c0_2] : memref<32x32xf32, #tpu.memory_space<vmem>>, vector<32x32xf32>
    %cst = arith.constant dense<0.000000e+00> : vector<8x32xf32>
    %2 = tpu.matmul %0, %1, %cst {dimension_numbers = #tpu.dot_dimension_numbers<[1], [0], [0], [1], [0, 0, 1, 1], [], []>} : vector<8x32xf32>, vector<32x32xf32>, vector<8x32xf32> -> vector<8x32xf32>
    %c0_3 = arith.constant 0 : index
    %c0_4 = arith.constant 0 : index
    %3 = vector.load %arg3[%c0_3, %c0_4] : memref<1x32xf32, #tpu.memory_space<vmem>>, vector<1x32xf32>
    %4 = vector.broadcast %3 : vector<1x32xf32> to vector<8x32xf32>
    %5 = arith.addf %2, %4 : vector<8x32xf32>
    %cst_5 = arith.constant dense<0.000000e+00> : vector<8xf32>
    %6 = vector.multi_reduction <add>, %5, %cst_5 [1] : vector<8x32xf32> to vector<8xf32>
    %7 = vector.shape_cast %6 : vector<8xf32> to vector<8x1xf32>
    %cst_6 = arith.constant 3.125000e-02 : f32
    %8 = vector.broadcast %cst_6 : f32 to vector<8x1xf32>
    %9 = arith.mulf %7, %8 : vector<8x1xf32>
    %10 = vector.broadcast %9 : vector<8x1xf32> to vector<8x32xf32>
    %11 = arith.subf %5, %10 : vector<8x32xf32>
    %12 = arith.mulf %11, %11 : vector<8x32xf32>
    %cst_7 = arith.constant dense<0.000000e+00> : vector<8xf32>
    %13 = vector.multi_reduction <add>, %12, %cst_7 [1] : vector<8x32xf32> to vector<8xf32>
    %14 = vector.shape_cast %13 : vector<8xf32> to vector<8x1xf32>
    %cst_8 = arith.constant 3.125000e-02 : f32
    %15 = vector.broadcast %cst_8 : f32 to vector<8x1xf32>
    %16 = arith.mulf %14, %15 : vector<8x1xf32>
    %cst_9 = arith.constant 9.99999974E-6 : f32
    %17 = vector.broadcast %cst_9 : f32 to vector<8x1xf32>
    %18 = arith.addf %16, %17 : vector<8x1xf32>
    %19 = math.rsqrt %18 : vector<8x1xf32>
    %20 = vector.broadcast %19 : vector<8x1xf32> to vector<8x32xf32>
    %21 = arith.mulf %11, %20 : vector<8x32xf32>
    %c0_10 = arith.constant 0 : index
    %c0_11 = arith.constant 0 : index
    %22 = vector.load %arg4[%c0_10, %c0_11] : memref<1x32xf32, #tpu.memory_space<vmem>>, vector<1x32xf32>
    %23 = vector.broadcast %22 : vector<1x32xf32> to vector<8x32xf32>
    %24 = arith.mulf %21, %23 : vector<8x32xf32>
    %c0_12 = arith.constant 0 : index
    %c0_13 = arith.constant 0 : index
    %25 = vector.load %arg5[%c0_12, %c0_13] : memref<1x32xf32, #tpu.memory_space<vmem>>, vector<1x32xf32>
    %26 = vector.broadcast %25 : vector<1x32xf32> to vector<8x32xf32>
    %27 = arith.addf %24, %26 : vector<8x32xf32>
    %cst_14 = arith.constant 5.000000e-01 : f32
    %28 = vector.broadcast %cst_14 : f32 to vector<8x32xf32>
    %29 = arith.mulf %28, %27 : vector<8x32xf32>
    %cst_15 = arith.constant 0.707106769 : f32
    %30 = vector.broadcast %cst_15 : f32 to vector<8x32xf32>
    %31 = arith.mulf %27, %30 : vector<8x32xf32>
    %32 = math.erf %31 : vector<8x32xf32>
    %cst_16 = arith.constant 1.000000e+00 : f32
    %33 = vector.broadcast %cst_16 : f32 to vector<8x32xf32>
    %34 = arith.addf %33, %32 : vector<8x32xf32>
    %35 = arith.mulf %29, %34 : vector<8x32xf32>
    %c0_17 = arith.constant 0 : index
    %c0_18 = arith.constant 0 : index
    %36 = vector.load %arg6[%c0_17, %c0_18] : memref<8x32xf32, #tpu.memory_space<vmem>>, vector<8x32xf32>
    tpu.vector_store %arg6[%c0_17, %c0_18], %35 {strides = array<i32>} : memref<8x32xf32, #tpu.memory_space<vmem>>, vector<8x32xf32>,
    return
  }
  func.func @transform_0(%arg0: i32) -> (i32, i32) {
    %c0_i32 = arith.constant 0 : i32
    %c0_i32_0 = arith.constant 0 : i32
    return %arg0, %c0_i32 : i32, i32
  }
  func.func @transform_1(%arg0: i32) -> (i32, i32) {
    %c0_i32 = arith.constant 0 : i32
    %c0_i32_0 = arith.constant 0 : i32
    %c0_i32_1 = arith.constant 0 : i32
    return %c0_i32, %c0_i32_0 : i32, i32
  }
  func.func @transform_2(%arg0: i32) -> (i32, i32) {
    %c0_i32 = arith.constant 0 : i32
    %c0_i32_0 = arith.constant 0 : i32
    %c0_i32_1 = arith.constant 0 : i32
    return %c0_i32, %c0_i32_0 : i32, i32
  }
  func.func @transform_3(%arg0: i32) -> (i32, i32) {
    %c0_i32 = arith.constant 0 : i32
    %c0_i32_0 = arith.constant 0 : i32
    %c0_i32_1 = arith.constant 0 : i32
    return %c0_i32, %c0_i32_0 : i32, i32
  }
  func.func @transform_4(%arg0: i32) -> (i32, i32) {
    %c0_i32 = arith.constant 0 : i32
    %c0_i32_0 = arith.constant 0 : i32
    %c0_i32_1 = arith.constant 0 : i32
    return %c0_i32, %c0_i32_0 : i32, i32
  }
  func.func @transform_5(%arg0: i32) -> (i32, i32) {
    %c0_i32 = arith.constant 0 : i32
    %c0_i32_0 = arith.constant 0 : i32
    return %arg0, %c0_i32 : i32, i32
  }
}

</mosaic_0001>

<llo_original>
// kernel: tpu_custom_call.1
$region0: #{tpu_custom_call.1}
  #allocation0 [shape = 'u32[]', space=smem, size = 0x4, offset = 0x4, fixed_abs, tag = 'smem constant byte address 0x4 - core index']
  #allocation1 [shape = 'u32[72,128]{1,0:T(1,128)}', space=vmem, size = 0x9000, scoped, tag = 'internal scratch']
  %s0 = inlined_call_operand.hbm [shape: f32[16,32], index: 0, kind: input, shape index: {}]
  %s1 = inlined_call_operand.hbm [shape: f32[32,32], index: 1, kind: input, shape index: {}]
  %s2 = inlined_call_operand.vmem [shape: f32[1,32], index: 2, kind: input, shape index: {}]
  %s3 = inlined_call_operand.vmem [shape: f32[1,32], index: 3, kind: input, shape index: {}]
  %s4 = inlined_call_operand.vmem [shape: f32[1,32], index: 4, kind: input, shape index: {}]
  %s5 = inlined_call_operand.hbm [shape: f32[16,32], index: 5, kind: output, shape index: {}]
  %s6 = sld [smem:[#allocation0]]
  $region61: #{tpu_custom_call.1} parent=0
    _
  %s8 = ssub.s32 1, %s6
  %s9 = scalar_select 0, %s8, %s6
  $region1: #{tpu_custom_call.1} parent=0
    #allocation2 [shape = 'u8[8192]{0}', space=vmem, size = 0x2000, scoped, tag = 'input window, operand 0']
    #allocation3 [shape = 's32[2]{0}', space=sflag, size = 0x8, scoped, tag = 'scoped memory for tpu_custom_call.1']
    #allocation4 [shape = 's32[2]{0}', space=sflag, size = 0x8, scoped, tag = 'scoped memory for tpu_custom_call.1']
    #allocation5 [shape = 'u8[16384]{0}', space=vmem, size = 0x4000, scoped, tag = 'input window, operand 1, single buffered']
    #allocation6 [shape = 's32[1]{0}', space=sflag, size = 0x4, scoped, tag = 'scoped memory for tpu_custom_call.1']
    #allocation7 [shape = 'u8[8192]{0}', space=vmem, size = 0x2000, scoped, tag = 'output window, operand 0']
    %10 = vsyncpa [#allocation3], 0
    %s11 = scalar_lea.sflag [#allocation3], 1
    %12 = vsyncpa %s11, 0
    %13 = vsyncpa [#allocation6], 0
    %14 = vsyncpa [#allocation4], 0
    %s15 = scalar_lea.sflag [#allocation4], 1
    %16 = vsyncpa %s15, 0
    loop: start=0, step=1, limit=4
    $region2: #{tpu_custom_call.1} parent=1 // loop_pre_header
      _
    $region3: #{tpu_custom_call.1} parent=1 // loop_header
      %s18 = sphi 0, %s22
      %p19 = scmp.ge.s32.totalorder %s18, 4
      %s28 = sphi 0, %s30
      %s31 = sphi 0, %s28
      %s32 = sphi 0, %s31
      %s48 = sphi 0, %s32
      %s52 = sphi 0, %s52
      %s54 = sphi 0, %s52
      %s55 = sphi 0, %s54
      %s69 = sphi 0, %s55
      %s73 = sphi 0, %s73
      %s75 = sphi 0, %s73
      %s76 = sphi 0, %s75
      %s90 = sphi 0, %s76
      %s94 = sphi 0, %s94
      %s96 = sphi 0, %s94
      %s97 = sphi 0, %s96
      %s111 = sphi 0, %s97
      %s115 = sphi 0, %s115
      %s117 = sphi 0, %s115
      %s118 = sphi 0, %s117
      %s132 = sphi 0, %s118
      %s138 = sphi 0, %s140
      %s141 = sphi 0, %s138
      %s142 = sphi 0, %s141
      %s158 = sphi 0, %s142
    $region4: #{tpu_custom_call.1} parent=1 // loop_header_branch
      %21 = sbr.rel (%p19) target = $region8
    $region5: #{tpu_custom_call.1} parent=1 // loop_body
      %s23 = ssub.s32 %s18, 1
      %s24 = ssub.s32 %s18, 2
      %s25 = sadd.s32 %s18, 1
      %s26 = ssub.s32 %s18, %s25
      %p27 = scmp.eq.s32.totalorder %s26, 0
      %s29 = sadd.s32 %s28, 1
      %s30 = scalar_select %p27, %s28, %s29
      %p33 = pneg %p27
      %p34 = scmp.eq.s32.totalorder %s18, 1
      %p35 = por %p33, %p34
      %p36 = scmp.ne.s32.totalorder %s28, %s31
      %p37 = scmp.eq.s32.totalorder %s18, 0
      %p38 = por %p36, %p37
      %p39 = scmp.ne.s32.totalorder %s28, %s31
      %p40 = scmp.eq.s32.totalorder %s23, 1
      %p41 = por %p39, %p40
      %p42 = scmp.ne.s32.totalorder %s31, %s32
      %p43 = scmp.eq.s32.totalorder %s23, 0
      %p44 = por %p42, %p43
      %p45 = scmp.ne.s32.totalorder %s31, %s32
      %p46 = scmp.eq.s32.totalorder %s24, 1
      %p47 = por %p45, %p46
      %p49 = scmp.ne.s32.totalorder %s32, %s48
      %p50 = scmp.eq.s32.totalorder %s24, 0
      %p51 = por %p49, %p50
      %s53 = sadd.s32 %s52, 1
      %p56 = scmp.eq.s32.totalorder %s18, 1
      %p57 = scmp.ne.s32.totalorder %s52, %s54
      %p58 = scmp.eq.s32.totalorder %s18, 0
      %p59 = por %p57, %p58
      %p60 = scmp.ne.s32.totalorder %s52, %s54
      %p61 = scmp.eq.s32.totalorder %s23, 1
      %p62 = por %p60, %p61
      %p63 = scmp.ne.s32.totalorder %s54, %s55
      %p64 = scmp.eq.s32.totalorder %s23, 0
      %p65 = por %p63, %p64
      %p66 = scmp.ne.s32.totalorder %s54, %s55
      %p67 = scmp.eq.s32.totalorder %s24, 1
      %p68 = por %p66, %p67
      %p70 = scmp.ne.s32.totalorder %s55, %s69
      %p71 = scmp.eq.s32.totalorder %s24, 0
      %p72 = por %p70, %p71
      %s74 = sadd.s32 %s73, 1
      %p77 = scmp.eq.s32.totalorder %s18, 1
      %p78 = scmp.ne.s32.totalorder %s73, %s75
      %p79 = scmp.eq.s32.totalorder %s18, 0
      %p80 = por %p78, %p79
      %p81 = scmp.ne.s32.totalorder %s73, %s75
      %p82 = scmp.eq.s32.totalorder %s23, 1
      %p83 = por %p81, %p82
      %p84 = scmp.ne.s32.totalorder %s75, %s76
      %p85 = scmp.eq.s32.totalorder %s23, 0
      %p86 = por %p84, %p85
      %p87 = scmp.ne.s32.totalorder %s75, %s76
      %p88 = scmp.eq.s32.totalorder %s24, 1
      %p89 = por %p87, %p88
      %p91 = scmp.ne.s32.totalorder %s76, %s90
      %p92 = scmp.eq.s32.totalorder %s24, 0
      %p93 = por %p91, %p92
      %s95 = sadd.s32 %s94, 1
      %p98 = scmp.eq.s32.totalorder %s18, 1
      %p99 = scmp.ne.s32.totalorder %s94, %s96
      %p100 = scmp.eq.s32.totalorder %s18, 0
      %p101 = por %p99, %p100
      %p102 = scmp.ne.s32.totalorder %s94, %s96
      %p103 = scmp.eq.s32.totalorder %s23, 1
      %p104 = por %p102, %p103
      %p105 = scmp.ne.s32.totalorder %s96, %s97
      %p106 = scmp.eq.s32.totalorder %s23, 0
      %p107 = por %p105, %p106
      %p108 = scmp.ne.s32.totalorder %s96, %s97
      %p109 = scmp.eq.s32.totalorder %s24, 1
      %p110 = por %p108, %p109
      %p112 = scmp.ne.s32.totalorder %s97, %s111
      %p113 = scmp.eq.s32.totalorder %s24, 0
      %p114 = por %p112, %p113
      %s116 = sadd.s32 %s115, 1
      %p119 = scmp.eq.s32.totalorder %s18, 1
      %p120 = scmp.ne.s32.totalorder %s115, %s117
      %p121 = scmp.eq.s32.totalorder %s18, 0
      %p122 = por %p120, %p121
      %p123 = scmp.ne.s32.totalorder %s115, %s117
      %p124 = scmp.eq.s32.totalorder %s23, 1
      %p125 = por %p123, %p124
      %p126 = scmp.ne.s32.totalorder %s117, %s118
      %p127 = scmp.eq.s32.totalorder %s23, 0
      %p128 = por %p126, %p127
      %p129 = scmp.ne.s32.totalorder %s117, %s118
      %p130 = scmp.eq.s32.totalorder %s24, 1
      %p131 = por %p129, %p130
      %p133 = scmp.ne.s32.totalorder %s118, %s132
      %p134 = scmp.eq.s32.totalorder %s24, 0
      %p135 = por %p133, %p134
      %s136 = ssub.s32 %s18, %s25
      %p137 = scmp.eq.s32.totalorder %s136, 0
      %s139 = sadd.s32 %s138, 1
      %s140 = scalar_select %p137, %s138, %s139
      %p143 = pneg %p137
      %p144 = scmp.eq.s32.totalorder %s18, 1
      %p145 = por %p143, %p144
      %p146 = scmp.ne.s32.totalorder %s138, %s141
      %p147 = scmp.eq.s32.totalorder %s18, 0
      %p148 = por %p146, %p147
      %p149 = scmp.ne.s32.totalorder %s138, %s141
      %p150 = scmp.eq.s32.totalorder %s23, 1
      %p151 = por %p149, %p150
      %p152 = scmp.ne.s32.totalorder %s141, %s142
      %p153 = scmp.eq.s32.totalorder %s23, 0
      %p154 = por %p152, %p153
      %p155 = scmp.ne.s32.totalorder %s141, %s142
      %p156 = scmp.eq.s32.totalorder %s24, 1
      %p157 = por %p155, %p156
      %p159 = scmp.ne.s32.totalorder %s142, %s158
      %p160 = scmp.eq.s32.totalorder %s24, 0
      %p161 = por %p159, %p160
      %p162 = scmp.le.s32.totalorder 1, %s18
      %p163 = scmp.lt.s32.totalorder %s18, 3
      %p164 = pnand %p162, %p163
      %p165 = pneg %p164
      // Predicated region
      $region9: #{tpu_custom_call.1} parent=5 // pred_check
        _
      $region10: #{tpu_custom_call.1} parent=5 // pred_check_branch
        %167 = sbr.rel (%p164) target = $region12
      $region11: #{tpu_custom_call.1} parent=5 // pred_region
        %s168 = ssub.s32 %s18, 1
        // Predicated region
        $region13: #{tpu_custom_call.1} parent=11 // pred_check
          %p169 = pneg %p65
        $region14: #{tpu_custom_call.1} parent=11 // pred_check_branch
          %171 = sbr.rel (%p169) target = $region16
        $region15: #{tpu_custom_call.1} parent=11 // pred_region
          %173 = vsyncadd [#allocation6], 0
          %s174 = sshll.u32 %s1, 4
          %s175 = int_to_ptr.hbm [resolvable:$true] %s174
          %s176 = sshll.u32 [#allocation5], 4
          %s177 = int_to_ptr.vmem [resolvable:$true] %s176
          %182 = dma.hbm_to_vmem [thread:$0]  %s175, 512, %s177, [#allocation6], 128, 128, 8
        $region16: #{tpu_custom_call.1} parent=11 // pred_fallthru
          _
        // Predicated region
        $region17: #{tpu_custom_call.1} parent=11 // pred_check
          %p183 = pneg %p86
        $region18: #{tpu_custom_call.1} parent=11 // pred_check_branch
          %185 = sbr.rel (%p183) target = $region20
        $region19: #{tpu_custom_call.1} parent=11 // pred_region
          _
        $region20: #{tpu_custom_call.1} parent=11 // pred_fallthru
          _
        // Predicated region
        $region21: #{tpu_custom_call.1} parent=11 // pred_check
          %p186 = pneg %p107
        $region22: #{tpu_custom_call.1} parent=11 // pred_check_branch
          %188 = sbr.rel (%p186) target = $region24
        $region23: #{tpu_custom_call.1} parent=11 // pred_region
          _
        $region24: #{tpu_custom_call.1} parent=11 // pred_fallthru
          _
        // Predicated region
        $region25: #{tpu_custom_call.1} parent=11 // pred_check
          %p189 = pneg %p128
        $region26: #{tpu_custom_call.1} parent=11 // pred_check_branch
          %191 = sbr.rel (%p189) target = $region28
        $region27: #{tpu_custom_call.1} parent=11 // pred_region
          _
        $region28: #{tpu_custom_call.1} parent=11 // pred_fallthru
          _
      $region12: #{tpu_custom_call.1} parent=5 // pred_fallthru
        _
      %p192 = scmp.lt.s32.totalorder %s18, 2
      // Predicated region
      $region29: #{tpu_custom_call.1} parent=5 // pred_check
        %p193 = pneg %p192
      $region30: #{tpu_custom_call.1} parent=5 // pred_check_branch
        %195 = sbr.rel (%p193) target = $region32
      $region31: #{tpu_custom_call.1} parent=5 // pred_region
        // Predicated region
        $region33: #{tpu_custom_call.1} parent=31 // pred_check
          %p196 = pneg %p38
        $region34: #{tpu_custom_call.1} parent=31 // pred_check_branch
          %198 = sbr.rel (%p196) target = $region36
        $region35: #{tpu_custom_call.1} parent=31 // pred_region
          %s199 = sand.u32 %s28, 1
          %s200 = scalar_lea.sflag [#allocation3], %s199
          %s201 = sand.u32 %s28, 1
          %s202 = smul.addr %s201, 8
          %s203 = scalar_lea.vmem [#allocation2], %s202
          %205 = vsyncadd %s200, 0
          %s206 = smul.addr %s18, 8
          %s207 = scalar_lea.hbm %s0, %s206
          %s209 = sshll.u32 %s207, 4
          %s210 = int_to_ptr.hbm [resolvable:$true] %s209
          %s211 = sshll.u32 %s203, 4
          %s212 = int_to_ptr.vmem [resolvable:$true] %s211
          %214 = dma.hbm_to_vmem [thread:$0]  %s210, 128, %s212, %s200
        $region36: #{tpu_custom_call.1} parent=31 // pred_fallthru
          _
      $region32: #{tpu_custom_call.1} parent=5 // pred_fallthru
        _
      %p215 = scmp.le.s32.totalorder 1, %s18
      %p216 = scmp.lt.s32.totalorder %s18, 3
      %p217 = pnand %p215, %p216
      %p218 = pneg %p217
      // Predicated region
      $region37: #{tpu_custom_call.1} parent=5 // pred_check
        _
      $region38: #{tpu_custom_call.1} parent=5 // pred_check_branch
        %220 = sbr.rel (%p217) target = $region40
      $region39: #{tpu_custom_call.1} parent=5 // pred_region
        %s221 = ssub.s32 %s18, 1
        %s222 = sand.u32 %s31, 1
        %s223 = scalar_lea.sflag [#allocation3], %s222
        %s224 = sand.u32 %s31, 1
        %s225 = smul.addr %s224, 8
        %s226 = scalar_lea.vmem [#allocation2], %s225
        // Predicated region
        $region41: #{tpu_custom_call.1} parent=39 // pred_check
          %p227 = pneg %p44
        $region42: #{tpu_custom_call.1} parent=39 // pred_check_branch
          %229 = sbr.rel (%p227) target = $region44
        $region43: #{tpu_custom_call.1} parent=39 // pred_region
          %231 = dma.done %s223, 128
        $region44: #{tpu_custom_call.1} parent=39 // pred_fallthru
          _
        // Predicated region
        $region45: #{tpu_custom_call.1} parent=39 // pred_check
          %p232 = pneg %p65
        $region46: #{tpu_custom_call.1} parent=39 // pred_check_branch
          %234 = sbr.rel (%p232) target = $region48
        $region47: #{tpu_custom_call.1} parent=39 // pred_region
          %236 = dma.done [#allocation6], 512
        $region48: #{tpu_custom_call.1} parent=39 // pred_fallthru
          _
        %s237 = sand.u32 %s31, 1
        %s238 = scalar_lea.sflag [#allocation3], %s237
        %s239 = sand.u32 %s31, 1
        %s240 = smul.addr %s239, 8
        %s241 = scalar_lea.vmem [#allocation2], %s240
        %p242 = pneg %p44
        %p243 = pneg %p41
        %p244 = pneg %p65
        %p245 = pneg %p62
        %p246 = pneg %p86
        %p247 = pneg %p83
        %p248 = pneg %p107
        %p249 = pneg %p104
        %p250 = pneg %p128
        %p251 = pneg %p125
        %p252 = pneg %p154
        %p253 = pneg %p151
        %s254 = sand.u32 %s141, 1
        %s255 = scalar_lea.sflag [#allocation4], %s254
        %s256 = sand.u32 %s141, 1
        %s257 = smul.addr %s256, 8
        %s258 = scalar_lea.vmem [#allocation7], %s257
        %v259 = vld [vmem:[%s226] sm:$0xff]
        %v260 = vld [vmem:[#allocation5] sm:$0xff]
        %v261 = vld [vmem:[#allocation5 + $0x8] sm:$0xff]
        %v262 = vld [vmem:[#allocation5 + $0x10] sm:$0xff]
        %v263 = vld [vmem:[#allocation5 + $0x18] sm:$0xff]
        %v264 = vld [vmem:[%s2] sm:$0x1]
        %v266 = vperm.slane %v264, 0
        %vm268 = vcmask 261120
        %v270 = vsel %vm268, %v259, 0
        %272 = vmatpush.msra.mxu0 0.0
        %273 = vmatpush.msra.mxu0 0.0
        %274 = vmatpush.msra.mxu0 0.0
        %275 = vmatpush.msra.mxu0 0.0
        %276 = vmatpush.msra.mxu0 0.0
        %277 = vmatpush.msra.mxu0 0.0
        %278 = vmatpush.msra.mxu0 0.0
        %279 = vmatpush.msra.mxu0 0.0
        %280 = vmatpush.msra.mxu0 0.0
        %281 = vmatpush.msra.mxu0 0.0
        %282 = vmatpush.msra.mxu0 0.0
        %283 = vmatpush.msra.mxu0 0.0
        %284 = vmatpush.msra.mxu0 %v263
        %285 = vmatpush.msra.mxu0 %v262
        %286 = vmatpush.msra.mxu0 %v261
        %287 = vmatpush.msra.mxu0 %v260
        %288 = vmatmul.f32.gmra.mxu0 %v270
        %v289 = vpop.f32.mrf.mxu0
        %v290 = vadd.f32 %v266, %v289
        %291 = vdwg.mxu0
        %v292 = vsel %vm268, %v290, 0.0
        %293 = vadd.xlane.f32.xlu0 %v292
        %v294 = vpop.xlane.xlu0 %293
        %v295 = vmul.f32 %v294, 0.03125
        %v296 = vsub.f32 %v290, %v295
        %v297 = vmul.f32 %v296, %v296
        %v298 = vsel %vm268, %v297, 0.0
        %299 = vadd.xlane.f32.xlu0 %v298
        %v300 = vpop.xlane.xlu0 %299
        %v301 = vmul.f32 %v300, 0.03125
        %v302 = vadd.f32 %v301, 1e-05
        %v303 = vrsqrt.pop %v302
        %v304 = vmul.f32 %v303, %v302
        %v305 = vmul.f32 %v304, %v303
        %v306 = vmul.f32 0.5, %v305
        %v307 = vsub.f32 1.5, %v306
        %v308 = vmul.f32 %v303, %v307
        %vm309 = vweird.f32 %v302
        %vm310 = vweird.f32 %v303
        %vm311 = vmor %vm309, %vm310
        %v312 = vsel %vm311, %v303, %v308
        %v313 = vmul.f32 %v296, %v312
        %v314 = vld [vmem:[%s3] sm:$0x1]
        %v316 = vperm.slane %v314, 0
        %v318 = vmul.f32 %v313, %v316
        %v319 = vld [vmem:[%s4] sm:$0x1]
        %v321 = vperm.slane %v319, 0
        %v323 = vadd.f32 %v318, %v321
        %v324 = vmul.f32 %v323, 0.5
        %v325 = vmul.f32 %v323, 0.70710677
        %v326 = vmul.f32 %v325, %v325
        %v327 = vmin.f32 16.0, %v326
        %v328 = vmul.f32 %v327, 2.1237322e-06
        %v329 = vadd.f32 %v328, 0.00028619796
        %v330 = vmul.f32 %v327, %v329
        %v331 = vadd.f32 %v330, 0.0036580483
        %v332 = vmul.f32 %v327, %v331
        %v333 = vadd.f32 %v332, 0.05243302
        %v334 = vmul.f32 %v327, %v333
        %v335 = vadd.f32 %v334, 0.18741608
        %v336 = vmul.f32 %v327, %v335
        %v337 = vadd.f32 %v336, 1.1283791
        %v338 = vmul.f32 %v325, %v337
        %v339 = vmul.f32 %v327, 3.8918573e-05
        %v340 = vadd.f32 %v339, 0.001143296
        %v341 = vmul.f32 %v327, %v340
        %v342 = vadd.f32 %v341, 0.014752088
        %v343 = vmul.f32 %v327, %v342
        %v344 = vadd.f32 %v343, 0.112945676
        %v345 = vmul.f32 %v327, %v344
        %v346 = vadd.f32 %v345, 0.4994258
        %v347 = vmul.f32 %v327, %v346
        %v348 = vadd.f32 %v347, 1.0
        %v349 = vrcp.pop %v348
        %v350 = vmul.f32 %v348, %v349
        %v351 = vsub.f32 1.0, %v350
        %v352 = vmul.f32 %v349, %v351
        %v353 = vadd.f32 %v349, %v352
        %vm354 = vweird.f32 %v348
        %vm355 = vweird.f32 %v349
        %vm356 = vmor %vm354, %vm355
        %v357 = vsel %vm356, %v349, %v353
        %v358 = vand.u32 2147483647, %v348
        %vm359 = vcmp.eq.f32.partialorder %v358, 8.507059e+37
        %v360 = vand.u32 %v348, 2147483648
        %v361 = vor.u32 1.1754944e-38, %v360
        %v362 = vsel %vm359, %v361, %v357
        %v363 = vmul.f32 %v338, %v362
        %v364 = vmin.f32 %v363, 1.0
        %v365 = vmax.f32 %v364, -1.0
        %v366 = vadd.f32 %v365, 1.0
        %v367 = vmul.f32 %v324, %v366
        %368 = vst.msk [vmem:[%s258] sm:$0xff] %vm268, %v367
        %s369 = sand.u32 %s141, 1
        %s370 = scalar_lea.sflag [#allocation4], %s369
        %s371 = sand.u32 %s141, 1
        %s372 = smul.addr %s371, 8
        %s373 = scalar_lea.vmem [#allocation7], %s372
        // Predicated region
        $region49: #{tpu_custom_call.1} parent=39 // pred_check
          %p374 = pneg %p151
        $region50: #{tpu_custom_call.1} parent=39 // pred_check_branch
          %376 = sbr.rel (%p374) target = $region52
        $region51: #{tpu_custom_call.1} parent=39 // pred_region
          %378 = vsyncadd %s370, 0
          %s379 = smul.addr %s23, 8
          %s380 = scalar_lea.hbm %s5, %s379
          %s382 = sshll.u32 %s373, 4
          %s383 = int_to_ptr.vmem [resolvable:$true] %s382
          %s384 = sshll.u32 %s380, 4
          %s385 = int_to_ptr.hbm [resolvable:$true] %s384
          %387 = dma.vmem_to_hbm [thread:$0]  %s383, 128, %s385, %s370
        $region52: #{tpu_custom_call.1} parent=39 // pred_fallthru
          _
      $region40: #{tpu_custom_call.1} parent=5 // pred_fallthru
        _
      %p388 = scmp.le.s32.totalorder 2, %s18
      // Predicated region
      $region53: #{tpu_custom_call.1} parent=5 // pred_check
        %p389 = pneg %p388
      $region54: #{tpu_custom_call.1} parent=5 // pred_check_branch
        %391 = sbr.rel (%p389) target = $region56
      $region55: #{tpu_custom_call.1} parent=5 // pred_region
        %s392 = ssub.s32 %s18, 2
        // Predicated region
        $region57: #{tpu_custom_call.1} parent=55 // pred_check
          %p393 = pneg %p157
        $region58: #{tpu_custom_call.1} parent=55 // pred_check_branch
          %395 = sbr.rel (%p393) target = $region60
        $region59: #{tpu_custom_call.1} parent=55 // pred_region
          %s396 = sand.u32 %s142, 1
          %s397 = scalar_lea.sflag [#allocation4], %s396
          %s398 = sand.u32 %s142, 1
          %s399 = smul.addr %s398, 8
          %s400 = scalar_lea.vmem [#allocation7], %s399
          %402 = dma.done %s397, 128
        $region60: #{tpu_custom_call.1} parent=55 // pred_fallthru
          _
      $region56: #{tpu_custom_call.1} parent=5 // pred_fallthru
        _
    $region6: #{tpu_custom_call.1} parent=1 // loop_footer
      %s22 = sadd.s32 1, %s18
    $region7: #{tpu_custom_call.1} parent=1 // loop_footer_branch
      %17 = sbr.rel target = $region3
    $region8: #{tpu_custom_call.1} parent=1 // loop_exit
      _
    %403 = vsyncpa [#allocation3], 1
    %s404 = scalar_lea.sflag [#allocation3], 1
    %405 = vsyncpa %s404, 1
    %406 = vsyncpa [#allocation6], 1
    %407 = vsyncpa [#allocation4], 1
    %s408 = scalar_lea.sflag [#allocation4], 1
    %409 = vsyncpa %s408, 1

</llo_original>
